<compile_context>
chip_gen: v7x
topology: tpu7x:2x2x1
jax: 0.10.0
libtpu: 0.0.40
codegen_flags: <defaults>
</compile_context>

<pallas_src>
import functools

import jax
import jax.numpy as jnp
from jax.experimental import pallas as pl
from jax.experimental.pallas import tpu as pltpu


def cmgn_kernel(x_ref, n_ref, w_ref, b_ref, bl_ref, o_ref, *, num_layers, dp):
    """One batch tile of lane-packed CMGN.

    x_ref  : (TB, DP)       packed input tile (DP = pack * D = 128 lanes)
    n_ref  : (DP, 2*DP)     [diag(W^T) | diag(V V^T)]  (fused first RHS)
    w_ref  : (DP, DP)       diag(W)    (post-chain RHS, no transposed contraction)
    b_ref  : (L, 1, DP)     per-layer biases, lane-tiled (f32)
    bl_ref : (1, DP)        output bias bL, lane-tiled (f32)
    """
    x = x_ref[...]                                                    # (TB, DP)

    # Single MXU pass produces BOTH x-dependent products up front:
    #   xN = [x @ W^T | x @ (V V^T)]
    # so all matmul work on x is issued ahead of the serial sigmoid chain.
    xN = jnp.dot(x, n_ref[...], preferred_element_type=jnp.float32)  # (TB, 2DP)
    Wx = xN[:, :dp]          # lane-tile-aligned static slices (no relayout)
    xG = xN[:, dp:]

    b = b_ref[...].astype(jnp.float32)                                # (L, 1, DP)

    # Serial recurrence (EUP critical path).  Wx + b[i] is independent VALU
    # work the scheduler overlaps under the sigmoid; no materialized temps.
    z = Wx + b[0]
    for i in range(1, num_layers):
        z = Wx + b[i] + jax.nn.sigmoid(z)
    sig = jax.nn.sigmoid(z)                                           # (TB, DP) f32

    # Only post-chain MXU op: sigmoid(z) @ W  (block-diagonal, packed).
    out = jnp.dot(sig.astype(w_ref.dtype), w_ref[...],
                  preferred_element_type=jnp.float32)                 # (TB, DP)
    out = out + xG + bl_ref[...].astype(jnp.float32)
    o_ref[...] = out.astype(o_ref.dtype)


def _block_diag(a, reps):
    """Block-diagonal repeat of a square matrix `a`, `reps` times."""
    if reps == 1:
        return a
    d = a.shape[0]
    out = jnp.zeros((reps * d, reps * d), a.dtype)
    for k in range(reps):
        out = out.at[k * d:(k + 1) * d, k * d:(k + 1) * d].set(a)
    return out


def cmgn_forward(x, W, V, biases, bL, *, num_layers, block_b=None):
    """CMGN forward. x: (B, D); W, V: (D, D); biases: (L, D); bL: (D,)."""
    B, D = x.shape
    dt = x.dtype

    # Lane-pack the tiny feature dim so the last dim is a full 128 lanes.
    pack = 1
    if D < 128 and 128 % D == 0 and B % (128 // D) == 0:
        pack = 128 // D
    Dp = pack * D
    Bp = B // pack

    # One-time algebraic precompute (amortized across all batch tiles):
    #   G = V @ V^T             ->  x @ V @ V^T == x @ G  (one fewer matmul)
    #   N = [diag(W^T)|diag(G)] ->  first matmul yields Wx and xG together
    #   diag(W)                 ->  post-chain RHS, kernel never transposes
    G = jnp.dot(V, V.T, preferred_element_type=jnp.float32).astype(dt)
    WT_d = _block_diag(W.T.astype(dt), pack)                   # (Dp, Dp)
    G_d = _block_diag(G, pack)                                  # (Dp, Dp)
    W_d = _block_diag(W.astype(dt), pack)                       # (Dp, Dp)
    N = jnp.concatenate([WT_d, G_d], axis=1)                    # (Dp, 2*Dp)

    b_p = jnp.tile(biases.astype(jnp.float32), (1, pack)).reshape(num_layers, 1, Dp)
    bL_p = jnp.tile(bL.astype(jnp.float32), pack).reshape(1, Dp)

    xp = x.reshape(Bp, Dp)                                      # packed input

    # Batch tile: as large as possible (per-grid-step overhead dominates at
    # this size), but keep >=2 grid steps so v7x megacore can split the
    # "parallel" batch axis across both TensorCores.
    if block_b is None:
        tb = min(512, Bp)
    else:
        tb = min(block_b, Bp)
    if tb == Bp and Bp >= 16 and Bp % 16 == 0:
        tb = Bp // 2
    if tb < Bp:
        tb = max(8, (tb // 8) * 8)                              # (8,128) sublane rule

    grid = (pl.cdiv(Bp, tb),)

    kernel = functools.partial(cmgn_kernel, num_layers=num_layers, dp=Dp)
    outp = pl.pallas_call(
        kernel,
        out_shape=jax.ShapeDtypeStruct((Bp, Dp), dt),
        grid=grid,
        in_specs=[
            pl.BlockSpec((tb, Dp), lambda i: (i, 0)),                # x: tiled over batch
            pl.BlockSpec((Dp, 2 * Dp), lambda i: (0, 0)),            # [W^T|G]: resident
            pl.BlockSpec((Dp, Dp), lambda i: (0, 0)),                # W: resident
            pl.BlockSpec((num_layers, 1, Dp), lambda i: (0, 0, 0)),  # biases: resident
            pl.BlockSpec((1, Dp), lambda i: (0, 0)),                 # bL: resident
        ],
        out_specs=pl.BlockSpec((tb, Dp), lambda i: (i, 0)),
        compiler_params=pltpu.CompilerParams(
            dimension_semantics=("parallel",),   # pipeline + megacore over batch
        ),
    )(xp, N, W_d, b_p, bL_p)

    return outp.reshape(B, D)


def cmgn_reference(x, W, V, biases, bL, *, num_layers):
    """Pure-JAX reference mirroring the PyTorch forward exactly."""
    Wx = x @ W.T
    z = Wx + biases[0]
    for i in range(1, num_layers):
        z = Wx + jax.nn.sigmoid(z) + biases[i]
    VTx = x @ V
    VTVx = VTx @ V.T
    Wsigma = jax.nn.sigmoid(z) @ W
    return Wsigma + VTVx + bL


if __name__ == "__main__":
    B = 256          # batch (lane-packed 4-wide -> 64 packed rows -> grid of 2)
    D = 32           # input_dim == hidden_dim == output_dim
    NUM_LAYERS = 3

    key = jax.random.PRNGKey(0)
    kx, kw, kv, kb, kbl = jax.random.split(key, 5)

    # Deterministic "randn"-style parameter init (synthetic, no checkpoint).
    x = jax.random.normal(kx, (B, D), dtype=jnp.float32)
    W = jax.random.normal(kw, (D, D), dtype=jnp.float32)   # (input_dim, hidden_dim)
    V = jax.random.normal(kv, (D, D), dtype=jnp.float32)   # (hidden_dim, input_dim)
    biases = jax.random.normal(kb, (NUM_LAYERS, D), dtype=jnp.float32)
    bL = jax.random.normal(kbl, (D,), dtype=jnp.float32)

    out = cmgn_forward(x, W, V, biases, bL, num_layers=NUM_LAYERS)
    out = jax.block_until_ready(out)

    ref = cmgn_reference(x, W, V, biases, bL, num_layers=NUM_LAYERS)
    assert out.shape == (B, D)
    # Tolerance accounts for the (mathematically exact) reassociation of
    # x@V@V^T -> x@(V V^T) and the fused/block-diagonal accumulation order.
    assert jnp.allclose(out, ref, atol=1e-3, rtol=1e-3), "mismatch vs reference"

    print("KERNEL_OK")
</pallas_src>

<mosaic_0001>
module attributes {stable_mosaic.version = 11 : i64} {
  func.func @cmgn_kernel(%arg0: i32, %arg1: memref<32x128xf32, #tpu.memory_space<vmem>>, %arg2: memref<128x256xf32, #tpu.memory_space<vmem>>, %arg3: memref<128x128xf32, #tpu.memory_space<vmem>>, %arg4: memref<3x1x128xf32, #tpu.memory_space<vmem>>, %arg5: memref<1x128xf32, #tpu.memory_space<vmem>>, %arg6: memref<32x128xf32, #tpu.memory_space<vmem>>) attributes {dimension_semantics = [#tpu.dimension_semantics<parallel>], iteration_bounds = array<i64: 2>, scalar_prefetch = 0 : i64, scratch_operands = 0 : i64, tpu.core_type = #tpu.core_type<tc>, window_params = [{transform_indices = @transform_0, window_bounds = array<i64: 32, 128>}, {pipeline_mode = #tpu.pipeline_mode<synchronous>, transform_indices = @transform_1, window_bounds = array<i64: 128, 256>}, {pipeline_mode = #tpu.pipeline_mode<synchronous>, transform_indices = @transform_2, window_bounds = array<i64: 128, 128>}, {pipeline_mode = #tpu.pipeline_mode<synchronous>, transform_indices = @transform_3, window_bounds = array<i64: 3, 1, 128>}, {pipeline_mode = #tpu.pipeline_mode<synchronous>, transform_indices = @transform_4, window_bounds = array<i64: 1, 128>}, {transform_indices = @transform_5, window_bounds = array<i64: 32, 128>}]} {
    %c0 = arith.constant 0 : index
    %c0_0 = arith.constant 0 : index
    %0 = vector.load %arg1[%c0, %c0_0] : memref<32x128xf32, #tpu.memory_space<vmem>>, vector<32x128xf32>
    %c0_1 = arith.constant 0 : index
    %c0_2 = arith.constant 0 : index
    %1 = vector.load %arg2[%c0_1, %c0_2] : memref<128x256xf32, #tpu.memory_space<vmem>>, vector<128x256xf32>
    %cst = arith.constant dense<0.000000e+00> : vector<32x256xf32>
    %2 = tpu.matmul %0, %1, %cst {dimension_numbers = #tpu.dot_dimension_numbers<[1], [0], [0], [1], [0, 0, 1, 1], [], []>} : vector<32x128xf32>, vector<128x256xf32>, vector<32x256xf32> -> vector<32x256xf32>
    %3 = vector.extract_strided_slice %2 {offsets = [0, 0], sizes = [32, 128], strides = [1, 1]} : vector<32x256xf32> to vector<32x128xf32>
    %4 = vector.extract_strided_slice %2 {offsets = [0, 128], sizes = [32, 128], strides = [1, 1]} : vector<32x256xf32> to vector<32x128xf32>
    %c0_3 = arith.constant 0 : index
    %c0_4 = arith.constant 0 : index
    %c0_5 = arith.constant 0 : index
    %5 = vector.load %arg4[%c0_3, %c0_4, %c0_5] : memref<3x1x128xf32, #tpu.memory_space<vmem>>, vector<3x1x128xf32>
    %6 = vector.extract_strided_slice %5 {offsets = [0, 0, 0], sizes = [1, 1, 128], strides = [1, 1, 1]} : vector<3x1x128xf32> to vector<1x1x128xf32>
    %7 = vector.shape_cast %6 : vector<1x1x128xf32> to vector<1x128xf32>
    %8 = vector.broadcast %7 : vector<1x128xf32> to vector<32x128xf32>
    %9 = arith.addf %3, %8 : vector<32x128xf32>
    %10 = vector.extract_strided_slice %5 {offsets = [1, 0, 0], sizes = [1, 1, 128], strides = [1, 1, 1]} : vector<3x1x128xf32> to vector<1x1x128xf32>
    %11 = vector.shape_cast %10 : vector<1x1x128xf32> to vector<1x128xf32>
    %12 = vector.broadcast %11 : vector<1x128xf32> to vector<32x128xf32>
    %13 = arith.addf %3, %12 : vector<32x128xf32>
    %14 = arith.negf %9 : vector<32x128xf32>
    %15 = math.exp %14 : vector<32x128xf32>
    %cst_6 = arith.constant 1.000000e+00 : f32
    %16 = vector.broadcast %cst_6 : f32 to vector<32x128xf32>
    %17 = arith.addf %16, %15 : vector<32x128xf32>
    %18 = arith.divf %16, %17 : vector<32x128xf32>
    %19 = arith.addf %13, %18 : vector<32x128xf32>
    %20 = vector.extract_strided_slice %5 {offsets = [2, 0, 0], sizes = [1, 1, 128], strides = [1, 1, 1]} : vector<3x1x128xf32> to vector<1x1x128xf32>
    %21 = vector.shape_cast %20 : vector<1x1x128xf32> to vector<1x128xf32>
    %22 = vector.broadcast %21 : vector<1x128xf32> to vector<32x128xf32>
    %23 = arith.addf %3, %22 : vector<32x128xf32>
    %24 = arith.negf %19 : vector<32x128xf32>
    %25 = math.exp %24 : vector<32x128xf32>
    %cst_7 = arith.constant 1.000000e+00 : f32
    %26 = vector.broadcast %cst_7 : f32 to vector<32x128xf32>
    %27 = arith.addf %26, %25 : vector<32x128xf32>
    %28 = arith.divf %26, %27 : vector<32x128xf32>
    %29 = arith.addf %23, %28 : vector<32x128xf32>
    %30 = arith.negf %29 : vector<32x128xf32>
    %31 = math.exp %30 : vector<32x128xf32>
    %cst_8 = arith.constant 1.000000e+00 : f32
    %32 = vector.broadcast %cst_8 : f32 to vector<32x128xf32>
    %33 = arith.addf %32, %31 : vector<32x128xf32>
    %34 = arith.divf %32, %33 : vector<32x128xf32>
    %c0_9 = arith.constant 0 : index
    %c0_10 = arith.constant 0 : index
    %35 = vector.load %arg3[%c0_9, %c0_10] : memref<128x128xf32, #tpu.memory_space<vmem>>, vector<128x128xf32>
    %cst_11 = arith.constant dense<0.000000e+00> : vector<32x128xf32>
    %36 = tpu.matmul %34, %35, %cst_11 {dimension_numbers = #tpu.dot_dimension_numbers<[1], [0], [0], [1], [0, 0, 1, 1], [], []>} : vector<32x128xf32>, vector<128x128xf32>, vector<32x128xf32> -> vector<32x128xf32>
    %37 = arith.addf %36, %4 : vector<32x128xf32>
    %c0_12 = arith.constant 0 : index
    %c0_13 = arith.constant 0 : index
    %38 = vector.load %arg5[%c0_12, %c0_13] : memref<1x128xf32, #tpu.memory_space<vmem>>, vector<1x128xf32>
    %39 = vector.broadcast %38 : vector<1x128xf32> to vector<32x128xf32>
    %40 = arith.addf %37, %39 : vector<32x128xf32>
    %c0_14 = arith.constant 0 : index
    %c0_15 = arith.constant 0 : index
    %41 = vector.load %arg6[%c0_14, %c0_15] : memref<32x128xf32, #tpu.memory_space<vmem>>, vector<32x128xf32>
    tpu.vector_store %arg6[%c0_14, %c0_15], %40 {strides = array<i32>} : memref<32x128xf32, #tpu.memory_space<vmem>>, vector<32x128xf32>,
    return
  }
  func.func @transform_0(%arg0: i32) -> (i32, i32) {
    %c0_i32 = arith.constant 0 : i32
    %c0_i32_0 = arith.constant 0 : i32
    return %arg0, %c0_i32 : i32, i32
  }
  func.func @transform_1(%arg0: i32) -> (i32, i32) {
    %c0_i32 = arith.constant 0 : i32
    %c0_i32_0 = arith.constant 0 : i32
    %c0_i32_1 = arith.constant 0 : i32
    return %c0_i32, %c0_i32_0 : i32, i32
  }
  func.func @transform_2(%arg0: i32) -> (i32, i32) {
    %c0_i32 = arith.constant 0 : i32
    %c0_i32_0 = arith.constant 0 : i32
    %c0_i32_1 = arith.constant 0 : i32
    return %c0_i32, %c0_i32_0 : i32, i32
  }
  func.func @transform_3(%arg0: i32) -> (i32, i32, i32) {
    %c0_i32 = arith.constant 0 : i32
    %c0_i32_0 = arith.constant 0 : i32
    %c0_i32_1 = arith.constant 0 : i32
    %c0_i32_2 = arith.constant 0 : i32
    return %c0_i32, %c0_i32_0, %c0_i32_1 : i32, i32, i32
  }
  func.func @transform_4(%arg0: i32) -> (i32, i32) {
    %c0_i32 = arith.constant 0 : i32
    %c0_i32_0 = arith.constant 0 : i32
    %c0_i32_1 = arith.constant 0 : i32
    return %c0_i32, %c0_i32_0 : i32, i32
  }
  func.func @transform_5(%arg0: i32) -> (i32, i32) {
    %c0_i32 = arith.constant 0 : i32
    %c0_i32_0 = arith.constant 0 : i32
    return %arg0, %c0_i32 : i32, i32
  }
}

</mosaic_0001>

<llo_original>
// kernel: tpu_custom_call.1
$region0: #{tpu_custom_call.1}
  #allocation0 [shape = 'u32[]', space=smem, size = 0x4, offset = 0x4, fixed_abs, tag = 'smem constant byte address 0x4 - core index']
  #allocation1 [shape = 'u32[144,128]{1,0:T(1,128)}', space=vmem, size = 0x12000, scoped, tag = 'internal scratch']
  %s0 = inlined_call_operand.hbm [shape: f32[64,128], index: 0, kind: input, shape index: {}]
  %s1 = inlined_call_operand.hbm [shape: f32[128,256], index: 1, kind: input, shape index: {}]
  %s2 = inlined_call_operand.hbm [shape: f32[128,128], index: 2, kind: input, shape index: {}]
  %s3 = inlined_call_operand.vmem [shape: f32[3,1,128], index: 3, kind: input, shape index: {}]
  %s4 = inlined_call_operand.vmem [shape: f32[1,128], index: 4, kind: input, shape index: {}]
  %s5 = inlined_call_operand.hbm [shape: f32[64,128], index: 5, kind: output, shape index: {}]
  %s6 = sld [smem:[#allocation0]]
  $region65: #{tpu_custom_call.1} parent=0
    _
  %s8 = ssub.s32 1, %s6
  %s9 = scalar_select 0, %s8, %s6
  $region1: #{tpu_custom_call.1} parent=0
    #allocation2 [shape = 'u8[32768]{0}', space=vmem, size = 0x8000, scoped, tag = 'input window, operand 0']
    #allocation3 [shape = 's32[2]{0}', space=sflag, size = 0x8, scoped, tag = 'scoped memory for tpu_custom_call.1']
    #allocation4 [shape = 's32[2]{0}', space=sflag, size = 0x8, scoped, tag = 'scoped memory for tpu_custom_call.1']
    #allocation5 [shape = 'u8[131072]{0}', space=vmem, size = 0x20000, scoped, tag = 'input window, operand 1, single buffered']
    #allocation6 [shape = 's32[1]{0}', space=sflag, size = 0x4, scoped, tag = 'scoped memory for tpu_custom_call.1']
    #allocation7 [shape = 'u8[65536]{0}', space=vmem, size = 0x10000, scoped, tag = 'input window, operand 2, single buffered']
    #allocation8 [shape = 'u8[32768]{0}', space=vmem, size = 0x8000, scoped, tag = 'output window, operand 0']
    %10 = vsyncpa [#allocation3], 0
    %s11 = scalar_lea.sflag [#allocation3], 1
    %12 = vsyncpa %s11, 0
    %13 = vsyncpa [#allocation6], 0
    %14 = vsyncpa [#allocation4], 0
    %s15 = scalar_lea.sflag [#allocation4], 1
    %16 = vsyncpa %s15, 0
    loop: start=0, step=1, limit=4
    $region2: #{tpu_custom_call.1} parent=1 // loop_pre_header
      _
    $region3: #{tpu_custom_call.1} parent=1 // loop_header
      %s18 = sphi 0, %s22
      %p19 = scmp.ge.s32.totalorder %s18, 4
      %s28 = sphi 0, %s30
      %s31 = sphi 0, %s28
      %s32 = sphi 0, %s31
      %s48 = sphi 0, %s32
      %s52 = sphi 0, %s52
      %s54 = sphi 0, %s52
      %s55 = sphi 0, %s54
      %s69 = sphi 0, %s55
      %s73 = sphi 0, %s73
      %s75 = sphi 0, %s73
      %s76 = sphi 0, %s75
      %s90 = sphi 0, %s76
      %s94 = sphi 0, %s94
      %s96 = sphi 0, %s94
      %s97 = sphi 0, %s96
      %s111 = sphi 0, %s97
      %s115 = sphi 0, %s115
      %s117 = sphi 0, %s115
      %s118 = sphi 0, %s117
      %s132 = sphi 0, %s118
      %s138 = sphi 0, %s140
      %s141 = sphi 0, %s138
      %s142 = sphi 0, %s141
      %s158 = sphi 0, %s142
    $region4: #{tpu_custom_call.1} parent=1 // loop_header_branch
      %21 = sbr.rel (%p19) target = $region8
    $region5: #{tpu_custom_call.1} parent=1 // loop_body
      %s23 = ssub.s32 %s18, 1
      %s24 = ssub.s32 %s18, 2
      %s25 = sadd.s32 %s18, 1
      %s26 = ssub.s32 %s18, %s25
      %p27 = scmp.eq.s32.totalorder %s26, 0
      %s29 = sadd.s32 %s28, 1
      %s30 = scalar_select %p27, %s28, %s29
      %p33 = pneg %p27
      %p34 = scmp.eq.s32.totalorder %s18, 1
      %p35 = por %p33, %p34
      %p36 = scmp.ne.s32.totalorder %s28, %s31
      %p37 = scmp.eq.s32.totalorder %s18, 0
      %p38 = por %p36, %p37
      %p39 = scmp.ne.s32.totalorder %s28, %s31
      %p40 = scmp.eq.s32.totalorder %s23, 1
      %p41 = por %p39, %p40
      %p42 = scmp.ne.s32.totalorder %s31, %s32
      %p43 = scmp.eq.s32.totalorder %s23, 0
      %p44 = por %p42, %p43
      %p45 = scmp.ne.s32.totalorder %s31, %s32
      %p46 = scmp.eq.s32.totalorder %s24, 1
      %p47 = por %p45, %p46
      %p49 = scmp.ne.s32.totalorder %s32, %s48
      %p50 = scmp.eq.s32.totalorder %s24, 0
      %p51 = por %p49, %p50
      %s53 = sadd.s32 %s52, 1
      %p56 = scmp.eq.s32.totalorder %s18, 1
      %p57 = scmp.ne.s32.totalorder %s52, %s54
      %p58 = scmp.eq.s32.totalorder %s18, 0
      %p59 = por %p57, %p58
      %p60 = scmp.ne.s32.totalorder %s52, %s54
      %p61 = scmp.eq.s32.totalorder %s23, 1
      %p62 = por %p60, %p61
      %p63 = scmp.ne.s32.totalorder %s54, %s55
      %p64 = scmp.eq.s32.totalorder %s23, 0
      %p65 = por %p63, %p64
      %p66 = scmp.ne.s32.totalorder %s54, %s55
      %p67 = scmp.eq.s32.totalorder %s24, 1
      %p68 = por %p66, %p67
      %p70 = scmp.ne.s32.totalorder %s55, %s69
      %p71 = scmp.eq.s32.totalorder %s24, 0
      %p72 = por %p70, %p71
      %s74 = sadd.s32 %s73, 1
      %p77 = scmp.eq.s32.totalorder %s18, 1
      %p78 = scmp.ne.s32.totalorder %s73, %s75
      %p79 = scmp.eq.s32.totalorder %s18, 0
      %p80 = por %p78, %p79
      %p81 = scmp.ne.s32.totalorder %s73, %s75
      %p82 = scmp.eq.s32.totalorder %s23, 1
      %p83 = por %p81, %p82
      %p84 = scmp.ne.s32.totalorder %s75, %s76
      %p85 = scmp.eq.s32.totalorder %s23, 0
      %p86 = por %p84, %p85
      %p87 = scmp.ne.s32.totalorder %s75, %s76
      %p88 = scmp.eq.s32.totalorder %s24, 1
      %p89 = por %p87, %p88
      %p91 = scmp.ne.s32.totalorder %s76, %s90
      %p92 = scmp.eq.s32.totalorder %s24, 0
      %p93 = por %p91, %p92
      %s95 = sadd.s32 %s94, 1
      %p98 = scmp.eq.s32.totalorder %s18, 1
      %p99 = scmp.ne.s32.totalorder %s94, %s96
      %p100 = scmp.eq.s32.totalorder %s18, 0
      %p101 = por %p99, %p100
      %p102 = scmp.ne.s32.totalorder %s94, %s96
      %p103 = scmp.eq.s32.totalorder %s23, 1
      %p104 = por %p102, %p103
      %p105 = scmp.ne.s32.totalorder %s96, %s97
      %p106 = scmp.eq.s32.totalorder %s23, 0
      %p107 = por %p105, %p106
      %p108 = scmp.ne.s32.totalorder %s96, %s97
      %p109 = scmp.eq.s32.totalorder %s24, 1
      %p110 = por %p108, %p109
      %p112 = scmp.ne.s32.totalorder %s97, %s111
      %p113 = scmp.eq.s32.totalorder %s24, 0
      %p114 = por %p112, %p113
      %s116 = sadd.s32 %s115, 1
      %p119 = scmp.eq.s32.totalorder %s18, 1
      %p120 = scmp.ne.s32.totalorder %s115, %s117
      %p121 = scmp.eq.s32.totalorder %s18, 0
      %p122 = por %p120, %p121
      %p123 = scmp.ne.s32.totalorder %s115, %s117
      %p124 = scmp.eq.s32.totalorder %s23, 1
      %p125 = por %p123, %p124
      %p126 = scmp.ne.s32.totalorder %s117, %s118
      %p127 = scmp.eq.s32.totalorder %s23, 0
      %p128 = por %p126, %p127
      %p129 = scmp.ne.s32.totalorder %s117, %s118
      %p130 = scmp.eq.s32.totalorder %s24, 1
      %p131 = por %p129, %p130
      %p133 = scmp.ne.s32.totalorder %s118, %s132
      %p134 = scmp.eq.s32.totalorder %s24, 0
      %p135 = por %p133, %p134
      %s136 = ssub.s32 %s18, %s25
      %p137 = scmp.eq.s32.totalorder %s136, 0
      %s139 = sadd.s32 %s138, 1
      %s140 = scalar_select %p137, %s138, %s139
      %p143 = pneg %p137
      %p144 = scmp.eq.s32.totalorder %s18, 1
      %p145 = por %p143, %p144
      %p146 = scmp.ne.s32.totalorder %s138, %s141
      %p147 = scmp.eq.s32.totalorder %s18, 0
      %p148 = por %p146, %p147
      %p149 = scmp.ne.s32.totalorder %s138, %s141
      %p150 = scmp.eq.s32.totalorder %s23, 1
      %p151 = por %p149, %p150
      %p152 = scmp.ne.s32.totalorder %s141, %s142
      %p153 = scmp.eq.s32.totalorder %s23, 0
      %p154 = por %p152, %p153
      %p155 = scmp.ne.s32.totalorder %s141, %s142
      %p156 = scmp.eq.s32.totalorder %s24, 1
      %p157 = por %p155, %p156
      %p159 = scmp.ne.s32.totalorder %s142, %s158
      %p160 = scmp.eq.s32.totalorder %s24, 0
      %p161 = por %p159, %p160
      %p162 = scmp.le.s32.totalorder 1, %s18
      %p163 = scmp.lt.s32.totalorder %s18, 3
      %p164 = pnand %p162, %p163
      %p165 = pneg %p164
      // Predicated region
      $region9: #{tpu_custom_call.1} parent=5 // pred_check
        _
      $region10: #{tpu_custom_call.1} parent=5 // pred_check_branch
        %167 = sbr.rel (%p164) target = $region12
      $region11: #{tpu_custom_call.1} parent=5 // pred_region
        %s168 = ssub.s32 %s18, 1
        // Predicated region
        $region13: #{tpu_custom_call.1} parent=11 // pred_check
          %p169 = pneg %p65
        $region14: #{tpu_custom_call.1} parent=11 // pred_check_branch
          %171 = sbr.rel (%p169) target = $region16
        $region15: #{tpu_custom_call.1} parent=11 // pred_region
          %s173 = ssub.s32 4096, 4096
          %174 = vsyncadd [#allocation6], %s173
          %s175 = sshll.u32 [#allocation5], 4
          %s176 = int_to_ptr.vmem [resolvable:$true] %s175
          %181 = dma.hbm_to_vmem [thread:$0]  %s1, 4096, %s176, [#allocation6], 256, 256, 16
        $region16: #{tpu_custom_call.1} parent=11 // pred_fallthru
          _
        // Predicated region
        $region17: #{tpu_custom_call.1} parent=11 // pred_check
          %p182 = pneg %p86
        $region18: #{tpu_custom_call.1} parent=11 // pred_check_branch
          %184 = sbr.rel (%p182) target = $region20
        $region19: #{tpu_custom_call.1} parent=11 // pred_region
          %s186 = ssub.s32 2048, 2048
          %187 = vsyncadd [#allocation6], %s186
          %s188 = sshll.u32 [#allocation7], 4
          %s189 = int_to_ptr.vmem [resolvable:$true] %s188
          %194 = dma.hbm_to_vmem [thread:$0]  %s2, 2048, %s189, [#allocation6], 128, 128, 8
        $region20: #{tpu_custom_call.1} parent=11 // pred_fallthru
          _
        // Predicated region
        $region21: #{tpu_custom_call.1} parent=11 // pred_check
          %p195 = pneg %p107
        $region22: #{tpu_custom_call.1} parent=11 // pred_check_branch
          %197 = sbr.rel (%p195) target = $region24
        $region23: #{tpu_custom_call.1} parent=11 // pred_region
          _
        $region24: #{tpu_custom_call.1} parent=11 // pred_fallthru
          _
        // Predicated region
        $region25: #{tpu_custom_call.1} parent=11 // pred_check
          %p198 = pneg %p128
        $region26: #{tpu_custom_call.1} parent=11 // pred_check_branch
          %200 = sbr.rel (%p198) target = $region28
        $region27: #{tpu_custom_call.1} parent=11 // pred_region
          _
        $region28: #{tpu_custom_call.1} parent=11 // pred_fallthru
          _
      $region12: #{tpu_custom_call.1} parent=5 // pred_fallthru
        _
      %p201 = scmp.lt.s32.totalorder %s18, 2
      // Predicated region
      $region29: #{tpu_custom_call.1} parent=5 // pred_check
        %p202 = pneg %p201
      $region30: #{tpu_custom_call.1} parent=5 // pred_check_branch
        %204 = sbr.rel (%p202) target = $region32
      $region31: #{tpu_custom_call.1} parent=5 // pred_region
        // Predicated region
        $region33: #{tpu_custom_call.1} parent=31 // pred_check
          %p205 = pneg %p38
        $region34: #{tpu_custom_call.1} parent=31 // pred_check_branch
          %207 = sbr.rel (%p205) target = $region36
        $region35: #{tpu_custom_call.1} parent=31 // pred_region
          %s208 = sand.u32 %s28, 1
          %s209 = scalar_lea.sflag [#allocation3], %s208
          %s210 = sand.u32 %s28, 1
          %s211 = smul.addr %s210, 32
          %s212 = scalar_lea.vmem [#allocation2], %s211
          %s213 = smul.u32 4, %s18
          %s215 = ssub.s32 512, 512
          %216 = vsyncadd %s209, %s215
          %s217 = smul.addr %s213, 128
          %s218 = scalar_lea.hbm %s0, %s217
          %s219 = sshll.u32 %s212, 4
          %s220 = int_to_ptr.vmem [resolvable:$true] %s219
          %225 = dma.hbm_to_vmem [thread:$0]  %s218, 512, %s220, %s209, 128, 128, 8
        $region36: #{tpu_custom_call.1} parent=31 // pred_fallthru
          _
      $region32: #{tpu_custom_call.1} parent=5 // pred_fallthru
        _
      %p226 = scmp.le.s32.totalorder 1, %s18
      %p227 = scmp.lt.s32.totalorder %s18, 3
      %p228 = pnand %p226, %p227
      %p229 = pneg %p228
      // Predicated region
      $region37: #{tpu_custom_call.1} parent=5 // pred_check
        _
      $region38: #{tpu_custom_call.1} parent=5 // pred_check_branch
        %231 = sbr.rel (%p228) target = $region40
      $region39: #{tpu_custom_call.1} parent=5 // pred_region
        %s232 = ssub.s32 %s18, 1
        %s233 = sand.u32 %s31, 1
        %s234 = scalar_lea.sflag [#allocation3], %s233
        %s235 = sand.u32 %s31, 1
        %s236 = smul.addr %s235, 32
        %s237 = scalar_lea.vmem [#allocation2], %s236
        // Predicated region
        $region41: #{tpu_custom_call.1} parent=39 // pred_check
          %p238 = pneg %p44
        $region42: #{tpu_custom_call.1} parent=39 // pred_check_branch
          %240 = sbr.rel (%p238) target = $region44
        $region43: #{tpu_custom_call.1} parent=39 // pred_region
          %241 = dma.done %s234, 512
        $region44: #{tpu_custom_call.1} parent=39 // pred_fallthru
          _
        // Predicated region
        $region45: #{tpu_custom_call.1} parent=39 // pred_check
          %p242 = pneg %p65
        $region46: #{tpu_custom_call.1} parent=39 // pred_check_branch
          %244 = sbr.rel (%p242) target = $region48
        $region47: #{tpu_custom_call.1} parent=39 // pred_region
          %245 = dma.done [#allocation6], 4096
        $region48: #{tpu_custom_call.1} parent=39 // pred_fallthru
          _
        // Predicated region
        $region49: #{tpu_custom_call.1} parent=39 // pred_check
          %p246 = pneg %p86
        $region50: #{tpu_custom_call.1} parent=39 // pred_check_branch
          %248 = sbr.rel (%p246) target = $region52
        $region51: #{tpu_custom_call.1} parent=39 // pred_region
          %249 = dma.done [#allocation6], 2048
        $region52: #{tpu_custom_call.1} parent=39 // pred_fallthru
          _
        %s250 = sand.u32 %s31, 1
        %s251 = scalar_lea.sflag [#allocation3], %s250
        %s252 = sand.u32 %s31, 1
        %s253 = smul.addr %s252, 32
        %s254 = scalar_lea.vmem [#allocation2], %s253
        %p255 = pneg %p44
        %p256 = pneg %p41
        %p257 = pneg %p65
        %p258 = pneg %p62
        %p259 = pneg %p86
        %p260 = pneg %p83
        %p261 = pneg %p107
        %p262 = pneg %p104
        %p263 = pneg %p128
        %p264 = pneg %p125
        %p265 = pneg %p154
        %p266 = pneg %p151
        %s267 = sand.u32 %s141, 1
        %s268 = scalar_lea.sflag [#allocation4], %s267
        %s269 = sand.u32 %s141, 1
        %s270 = smul.addr %s269, 32
        %s271 = scalar_lea.vmem [#allocation8], %s270
        %s272 = smul.u32 4, %s23
        %s273 = smul.u32 4, %s23
        %v274 = vld [vmem:[%s237] sm:$0xff]
        %v275 = vld [vmem:[%s237 + $0x8] sm:$0xff]
        %v276 = vld [vmem:[%s237 + $0x10] sm:$0xff]
        %v277 = vld [vmem:[%s237 + $0x18] sm:$0xff]
        %v278 = vld [vmem:[#allocation5] sm:$0xff]
        %v279 = vld [vmem:[#allocation5 + $0x8] sm:$0xff]
        %v280 = vld [vmem:[#allocation5 + $0x10] sm:$0xff]
        %v281 = vld [vmem:[#allocation5 + $0x18] sm:$0xff]
        %v282 = vld [vmem:[#allocation5 + $0x20] sm:$0xff]
        %v283 = vld [vmem:[#allocation5 + $0x28] sm:$0xff]
        %v284 = vld [vmem:[#allocation5 + $0x30] sm:$0xff]
        %v285 = vld [vmem:[#allocation5 + $0x38] sm:$0xff]
        %v286 = vld [vmem:[#allocation5 + $0x40] sm:$0xff]
        %v287 = vld [vmem:[#allocation5 + $0x48] sm:$0xff]
        %v288 = vld [vmem:[#allocation5 + $0x50] sm:$0xff]
        %v289 = vld [vmem:[#allocation5 + $0x58] sm:$0xff]
        %v290 = vld [vmem:[#allocation5 + $0x60] sm:$0xff]
        %v291 = vld [vmem:[#allocation5 + $0x68] sm:$0xff]
        %v292 = vld [vmem:[#allocation5 + $0x70] sm:$0xff]
        %v293 = vld [vmem:[#allocation5 + $0x78] sm:$0xff]
        %v294 = vld [vmem:[#allocation5 + $0x80] sm:$0xff]
        %v295 = vld [vmem:[#allocation5 + $0x88] sm:$0xff]
        %v296 = vld [vmem:[#allocation5 + $0x90] sm:$0xff]
        %v297 = vld [vmem:[#allocation5 + $0x98] sm:$0xff]
        %v298 = vld [vmem:[#allocation5 + $0xa0] sm:$0xff]
        %v299 = vld [vmem:[#allocation5 + $0xa8] sm:$0xff]
        %v300 = vld [vmem:[#allocation5 + $0xb0] sm:$0xff]
        %v301 = vld [vmem:[#allocation5 + $0xb8] sm:$0xff]
        %v302 = vld [vmem:[#allocation5 + $0xc0] sm:$0xff]
        %v303 = vld [vmem:[#allocation5 + $0xc8] sm:$0xff]
        %v304 = vld [vmem:[#allocation5 + $0xd0] sm:$0xff]
        %v305 = vld [vmem:[#allocation5 + $0xd8] sm:$0xff]
        %v306 = vld [vmem:[#allocation5 + $0xe0] sm:$0xff]
        %v307 = vld [vmem:[#allocation5 + $0xe8] sm:$0xff]
        %v308 = vld [vmem:[#allocation5 + $0xf0] sm:$0xff]
        %v309 = vld [vmem:[#allocation5 + $0xf8] sm:$0xff]
        %310 = vmatprep.subr.mxu0 %v279
        %311 = vmatpush1.msra.mxu0 %v278
        %312 = vmatprep.subr.mxu0 %v281
        %313 = vmatpush1.msra.mxu0 %v280
        %314 = vmatprep.subr.mxu0 %v283
        %315 = vmatpush1.msra.mxu0 %v282
        %316 = vmatprep.subr.mxu0 %v285
        %317 = vmatpush1.msra.mxu0 %v284
        %318 = vmatprep.subr.mxu0 %v287
        %319 = vmatpush1.msra.mxu0 %v286
        %320 = vmatprep.subr.mxu0 %v289
        %321 = vmatpush1.msra.mxu0 %v288
        %322 = vmatprep.subr.mxu0 %v291
        %323 = vmatpush1.msra.mxu0 %v290
        %324 = vmatprep.subr.mxu0 %v293
        %325 = vmatpush1.msra.mxu0 %v292
        %326 = vmatprep.subr.mxu0 %v295
        %327 = vmatpush1.msra.mxu0 %v294
        %328 = vmatprep.subr.mxu0 %v297
        %329 = vmatpush1.msra.mxu0 %v296
        %330 = vmatprep.subr.mxu0 %v299
        %331 = vmatpush1.msra.mxu0 %v298
        %332 = vmatprep.subr.mxu0 %v301
        %333 = vmatpush1.msra.mxu0 %v300
        %334 = vmatprep.subr.mxu0 %v303
        %335 = vmatpush1.msra.mxu0 %v302
        %336 = vmatprep.subr.mxu0 %v305
        %337 = vmatpush1.msra.mxu0 %v304
        %338 = vmatprep.subr.mxu0 %v307
        %339 = vmatpush1.msra.mxu0 %v306
        %340 = vmatprep.subr.mxu0 %v309
        %341 = vmatpush1.msra.mxu0 %v308
        %342 = vmatprep.subr.mxu0 0.0
        %343 = vmatpush1.msra.mxu0 0.0
        %344 = vmatprep.subr.mxu0 0.0
        %345 = vmatpush1.msra.mxu0 0.0
        %346 = vmatprep.subr.mxu0 0.0
        %347 = vmatpush1.msra.mxu0 0.0
        %348 = vmatprep.subr.mxu0 0.0
        %349 = vmatpush1.msra.mxu0 0.0
        %350 = vmatprep.subr.mxu0 0.0
        %351 = vmatpush1.msra.mxu0 0.0
        %352 = vmatprep.subr.mxu0 0.0
        %353 = vmatpush1.msra.mxu0 0.0
        %354 = vmatprep.subr.mxu0 0.0
        %355 = vmatpush1.msra.mxu0 0.0
        %356 = vmatprep.subr.mxu0 0.0
        %357 = vmatpush1.msra.mxu0 0.0
        %358 = vmatprep.subr.mxu0 0.0
        %359 = vmatpush1.msra.mxu0 0.0
        %360 = vmatprep.subr.mxu0 0.0
        %361 = vmatpush1.msra.mxu0 0.0
        %362 = vmatprep.subr.mxu0 0.0
        %363 = vmatpush1.msra.mxu0 0.0
        %364 = vmatprep.subr.mxu0 0.0
        %365 = vmatpush1.msra.mxu0 0.0
        %366 = vmatprep.subr.mxu0 0.0
        %367 = vmatpush1.msra.mxu0 0.0
        %368 = vmatprep.subr.mxu0 0.0
        %369 = vmatpush1.msra.mxu0 0.0
        %370 = vmatprep.subr.mxu0 0.0
        %371 = vmatpush1.msra.mxu0 0.0
        %372 = vmatprep.subr.mxu0 0.0
        %373 = vmatpush1.msra.mxu0 0.0
        %374 = vmatprep.mubr.f32.mxu0 0.0
        %375 = vmatmul.mubr.f32.gmra.mrb[0].mxu0 %v274
        %v376 = vpop.f32.mrb[0].mxu0
        %v377 = vadd.f32 0.0, %v376
        %v378 = vpop.f32.mrb[0].mxu0
        %v379 = vadd.f32 0.0, %v378
        %380 = vmatprep.mubr.f32.mxu0 0.0
        %381 = vmatmul.mubr.f32.gmra.mrb[0].mxu0 %v275
        %v382 = vpop.f32.mrb[0].mxu0
        %v383 = vadd.f32 0.0, %v382
        %v384 = vpop.f32.mrb[0].mxu0
        %v385 = vadd.f32 0.0, %v384
        %386 = vmatprep.mubr.f32.mxu0 0.0
        %387 = vmatmul.mubr.f32.gmra.mrb[0].mxu0 %v276
        %v388 = vpop.f32.mrb[0].mxu0
        %v389 = vadd.f32 0.0, %v388
        %v390 = vpop.f32.mrb[0].mxu0
        %v391 = vadd.f32 0.0, %v390
        %392 = vmatprep.mubr.f32.mxu0 0.0
        %393 = vmatmul.mubr.f32.gmra.mrb[0].mxu0 %v277
        %v394 = vpop.f32.mrb[0].mxu0
        %v395 = vadd.f32 0.0, %v394
        %v396 = vpop.f32.mrb[0].mxu0
        %v397 = vadd.f32 0.0, %v396
        %398 = vdwg.mxu0
        %v399 = vld [vmem:[%s3] sm:$0x1]
        %v400 = vld [vmem:[%s3 + $0x1] sm:$0x1]
        %v401 = vld [vmem:[%s3 + $0x2] sm:$0x1]
        %v403 = vlaneseq
        %v404 = vshrl.u32 %v403, 7
        %v405 = vsub.s32 0, %v404
        %v406 = vrot.slane %v399, %v405
        %v408 = vadd.f32 %v377, %v406
        %v409 = vadd.f32 %v383, %v406
        %v410 = vadd.f32 %v389, %v406
        %v411 = vadd.f32 %v395, %v406
        %v413 = vlaneseq
        %v414 = vshrl.u32 %v413, 7
        %v415 = vsub.s32 0, %v414
        %v416 = vrot.slane %v400, %v415
        %v418 = vadd.f32 %v377, %v416
        %v419 = vadd.f32 %v383, %v416
        %v420 = vadd.f32 %v389, %v416
        %v421 = vadd.f32 %v395, %v416
        %v422 = vxor.u32 %v408, 2147483648
        %v423 = vxor.u32 %v409, 2147483648
        %v424 = vxor.u32 %v410, 2147483648
        %v425 = vxor.u32 %v411, 2147483648
        %v426 = vmul.f32 %v422, 1.442695
        %v427 = vpow.pop %v426
        %v428 = vmul.f32 %v423, 1.442695
        %v429 = vpow.pop %v428
        %v430 = vmul.f32 %v424, 1.442695
        %v431 = vpow.pop %v430
        %v432 = vmul.f32 %v425, 1.442695
        %v433 = vpow.pop %v432
        %v434 = vadd.f32 %v427, 1.0
        %v435 = vadd.f32 %v429, 1.0
        %v436 = vadd.f32 %v431, 1.0
        %v437 = vadd.f32 %v433, 1.0
        %v438 = vrcp.pop %v434
        %v439 = vmul.f32 1.0, %v438
        %v440 = vrcp.pop %v435
        %v441 = vmul.f32 1.0, %v440
        %v442 = vrcp.pop %v436
        %v443 = vmul.f32 1.0, %v442
        %v444 = vrcp.pop %v437
        %v445 = vmul.f32 1.0, %v444
        %v446 = vadd.f32 %v418, %v439
        %v447 = vadd.f32 %v419, %v441
        %v448 = vadd.f32 %v420, %v443
        %v449 = vadd.f32 %v421, %v445
        %v451 = vlaneseq
        %v452 = vshrl.u32 %v451, 7
        %v453 = vsub.s32 0, %v452
        %v454 = vrot.slane %v401, %v453
        %v456 = vadd.f32 %v377, %v454
        %v457 = vadd.f32 %v383, %v454
        %v458 = vadd.f32 %v389, %v454
        %v459 = vadd.f32 %v395, %v454
        %v460 = vxor.u32 %v446, 2147483648
        %v461 = vxor.u32 %v447, 2147483648
        %v462 = vxor.u32 %v448, 2147483648
        %v463 = vxor.u32 %v449, 2147483648
        %v464 = vmul.f32 %v460, 1.442695
        %v465 = vpow.pop %v464
        %v466 = vmul.f32 %v461, 1.442695
        %v467 = vpow.pop %v466
        %v468 = vmul.f32 %v462, 1.442695
        %v469 = vpow.pop %v468
        %v470 = vmul.f32 %v463, 1.442695
        %v471 = vpow.pop %v470
        %v472 = vadd.f32 %v465, 1.0
        %v473 = vadd.f32 %v467, 1.0
        %v474 = vadd.f32 %v469, 1.0
        %v475 = vadd.f32 %v471, 1.0
        %v476 = vrcp.pop %v472
        %v477 = vmul.f32 1.0, %v476
        %v478 = vrcp.pop %v473
        %v479 = vmul.f32 1.0, %v478
        %v480 = vrcp.pop %v474
        %v481 = vmul.f32 1.0, %v480
        %v482 = vrcp.pop %v475
        %v483 = vmul.f32 1.0, %v482
        %v484 = vadd.f32 %v456, %v477
        %v485 = vadd.f32 %v457, %v479
        %v486 = vadd.f32 %v458, %v481
        %v487 = vadd.f32 %v459, %v483
        %v488 = vxor.u32 %v484, 2147483648
        %v489 = vxor.u32 %v485, 2147483648
        %v490 = vxor.u32 %v486, 2147483648
        %v491 = vxor.u32 %v487, 2147483648
        %v492 = vmul.f32 %v488, 1.442695
        %v493 = vpow.pop %v492
        %v494 = vmul.f32 %v489, 1.442695
        %v495 = vpow.pop %v494
        %v496 = vmul.f32 %v490, 1.442695
        %v497 = vpow.pop %v496
        %v498 = vmul.f32 %v491, 1.442695
        %v499 = vpow.pop %v498
        %v500 = vadd.f32 %v493, 1.0
        %v501 = vadd.f32 %v495, 1.0
        %v502 = vadd.f32 %v497, 1.0
        %v503 = vadd.f32 %v499, 1.0
        %v504 = vrcp.pop %v500
        %v505 = vmul.f32 1.0, %v504
        %v506 = vrcp.pop %v501
        %v507 = vmul.f32 1.0, %v506
        %v508 = vrcp.pop %v502
        %v509 = vmul.f32 1.0, %v508
        %v510 = vrcp.pop %v503
        %v511 = vmul.f32 1.0, %v510
        %v512 = vld [vmem:[#allocation7] sm:$0xff]
        %v513 = vld [vmem:[#allocation7 + $0x8] sm:$0xff]
        %v514 = vld [vmem:[#allocation7 + $0x10] sm:$0xff]
        %v515 = vld [vmem:[#allocation7 + $0x18] sm:$0xff]
        %v516 = vld [vmem:[#allocation7 + $0x20] sm:$0xff]
        %v517 = vld [vmem:[#allocation7 + $0x28] sm:$0xff]
        %v518 = vld [vmem:[#allocation7 + $0x30] sm:$0xff]
        %v519 = vld [vmem:[#allocation7 + $0x38] sm:$0xff]
        %v520 = vld [vmem:[#allocation7 + $0x40] sm:$0xff]
        %v521 = vld [vmem:[#allocation7 + $0x48] sm:$0xff]
        %v522 = vld [vmem:[#allocation7 + $0x50] sm:$0xff]
        %v523 = vld [vmem:[#allocation7 + $0x58] sm:$0xff]
        %v524 = vld [vmem:[#allocation7 + $0x60] sm:$0xff]
        %v525 = vld [vmem:[#allocation7 + $0x68] sm:$0xff]
        %v526 = vld [vmem:[#allocation7 + $0x70] sm:$0xff]
        %v527 = vld [vmem:[#allocation7 + $0x78] sm:$0xff]
        %528 = vmatprep.subr.mxu0 0.0
        %529 = vmatpush1.msra.mxu0 %v512
        %530 = vmatprep.subr.mxu0 0.0
        %531 = vmatpush1.msra.mxu0 %v513
        %532 = vmatprep.subr.mxu0 0.0
        %533 = vmatpush1.msra.mxu0 %v514
        %534 = vmatprep.subr.mxu0 0.0
        %535 = vmatpush1.msra.mxu0 %v515
        %536 = vmatprep.subr.mxu0 0.0
        %537 = vmatpush1.msra.mxu0 %v516
        %538 = vmatprep.subr.mxu0 0.0
        %539 = vmatpush1.msra.mxu0 %v517
        %540 = vmatprep.subr.mxu0 0.0
        %541 = vmatpush1.msra.mxu0 %v518
        %542 = vmatprep.subr.mxu0 0.0
        %543 = vmatpush1.msra.mxu0 %v519
        %544 = vmatprep.subr.mxu0 0.0
        %545 = vmatpush1.msra.mxu0 %v520
        %546 = vmatprep.subr.mxu0 0.0
        %547 = vmatpush1.msra.mxu0 %v521
        %548 = vmatprep.subr.mxu0 0.0
        %549 = vmatpush1.msra.mxu0 %v522
        %550 = vmatprep.subr.mxu0 0.0
        %551 = vmatpush1.msra.mxu0 %v523
        %552 = vmatprep.subr.mxu0 0.0
        %553 = vmatpush1.msra.mxu0 %v524
        %554 = vmatprep.subr.mxu0 0.0
        %555 = vmatpush1.msra.mxu0 %v525
        %556 = vmatprep.subr.mxu0 0.0
        %557 = vmatpush1.msra.mxu0 %v526
        %558 = vmatprep.subr.mxu0 0.0
        %559 = vmatpush1.msra.mxu0 %v527
        %560 = vmatprep.subr.mxu0 0.0
        %561 = vmatpush1.msra.mxu0 0.0
        %562 = vmatprep.subr.mxu0 0.0
        %563 = vmatpush1.msra.mxu0 0.0
        %564 = vmatprep.subr.mxu0 0.0
        %565 = vmatpush1.msra.mxu0 0.0
        %566 = vmatprep.subr.mxu0 0.0
        %567 = vmatpush1.msra.mxu0 0.0
        %568 = vmatprep.subr.mxu0 0.0
        %569 = vmatpush1.msra.mxu0 0.0
        %570 = vmatprep.subr.mxu0 0.0
        %571 = vmatpush1.msra.mxu0 0.0
        %572 = vmatprep.subr.mxu0 0.0
        %573 = vmatpush1.msra.mxu0 0.0
        %574 = vmatprep.subr.mxu0 0.0
        %575 = vmatpush1.msra.mxu0 0.0
        %576 = vmatprep.subr.mxu0 0.0
        %577 = vmatpush1.msra.mxu0 0.0
        %578 = vmatprep.subr.mxu0 0.0
        %579 = vmatpush1.msra.mxu0 0.0
        %580 = vmatprep.subr.mxu0 0.0
        %581 = vmatpush1.msra.mxu0 0.0
        %582 = vmatprep.subr.mxu0 0.0
        %583 = vmatpush1.msra.mxu0 0.0
        %584 = vmatprep.subr.mxu0 0.0
        %585 = vmatpush1.msra.mxu0 0.0
        %586 = vmatprep.subr.mxu0 0.0
        %587 = vmatpush1.msra.mxu0 0.0
        %588 = vmatprep.subr.mxu0 0.0
        %589 = vmatpush1.msra.mxu0 0.0
        %590 = vmatprep.subr.mxu0 0.0
        %591 = vmatpush1.msra.mxu0 0.0
        %592 = vmatprep.mubr.f32.mxu0 0.0
        %593 = vmatmul.mubr.f32.gmra.mrb[0].mxu0 %v505
        %v594 = vpop.f32.mrb[0].mxu0
        %v595 = vadd.f32 %v379, %v594
        %v596 = vpop.f32.mrb[0].mxu0
        %597 = vmatprep.mubr.f32.mxu0 0.0
        %598 = vmatmul.mubr.f32.gmra.mrb[0].mxu0 %v507
        %v599 = vpop.f32.mrb[0].mxu0
        %v600 = vadd.f32 %v385, %v599
        %v601 = vpop.f32.mrb[0].mxu0
        %602 = vmatprep.mubr.f32.mxu0 0.0
        %603 = vmatmul.mubr.f32.gmra.mrb[0].mxu0 %v509
        %v604 = vpop.f32.mrb[0].mxu0
        %v605 = vadd.f32 %v391, %v604
        %v606 = vpop.f32.mrb[0].mxu0
        %607 = vmatprep.mubr.f32.mxu0 0.0
        %608 = vmatmul.mubr.f32.gmra.mrb[0].mxu0 %v511
        %v609 = vpop.f32.mrb[0].mxu0
        %v610 = vadd.f32 %v397, %v609
        %v611 = vpop.f32.mrb[0].mxu0
        %612 = vdwg.mxu0
        %v613 = vld [vmem:[%s4] sm:$0x1]
        %v615 = vlaneseq
        %v616 = vshrl.u32 %v615, 7
        %v617 = vsub.s32 0, %v616
        %v618 = vrot.slane %v613, %v617
        %v620 = vadd.f32 %v595, %v618
        %v621 = vadd.f32 %v600, %v618
        %v622 = vadd.f32 %v605, %v618
        %v623 = vadd.f32 %v610, %v618
        %624 = vst [vmem:[%s271] sm:$0xff] %v620
        %625 = vst [vmem:[%s271 + $0x8] sm:$0xff] %v621
        %626 = vst [vmem:[%s271 + $0x10] sm:$0xff] %v622
        %627 = vst [vmem:[%s271 + $0x18] sm:$0xff] %v623
        %s628 = sand.u32 %s141, 1
        %s629 = scalar_lea.sflag [#allocation4], %s628
        %s630 = sand.u32 %s141, 1
        %s631 = smul.addr %s630, 32
        %s632 = scalar_lea.vmem [#allocation8], %s631
        // Predicated region
        $region53: #{tpu_custom_call.1} parent=39 // pred_check
          %p633 = pneg %p151
        $region54: #{tpu_custom_call.1} parent=39 // pred_check_branch
          %635 = sbr.rel (%p633) target = $region56
        $region55: #{tpu_custom_call.1} parent=39 // pred_region
          %s636 = smul.u32 4, %s23
          %s638 = ssub.s32 512, 512
          %639 = vsyncadd %s629, %s638
          %s640 = smul.addr %s636, 128
          %s641 = scalar_lea.hbm %s5, %s640
          %s642 = sshll.u32 %s632, 4
          %s643 = int_to_ptr.vmem [resolvable:$true] %s642
          %648 = dma.vmem_to_hbm [thread:$0]  %s643, 512, %s641, %s629, 128, 128, 8
        $region56: #{tpu_custom_call.1} parent=39 // pred_fallthru
          _
      $region40: #{tpu_custom_call.1} parent=5 // pred_fallthru
        _
      %p649 = scmp.le.s32.totalorder 2, %s18
      // Predicated region
      $region57: #{tpu_custom_call.1} parent=5 // pred_check
        %p650 = pneg %p649
      $region58: #{tpu_custom_call.1} parent=5 // pred_check_branch
        %652 = sbr.rel (%p650) target = $region60
      $region59: #{tpu_custom_call.1} parent=5 // pred_region
        %s653 = ssub.s32 %s18, 2
        // Predicated region
        $region61: #{tpu_custom_call.1} parent=59 // pred_check
          %p654 = pneg %p157
        $region62: #{tpu_custom_call.1} parent=59 // pred_check_branch
          %656 = sbr.rel (%p654) target = $region64
        $region63: #{tpu_custom_call.1} parent=59 // pred_region
          %s657 = sand.u32 %s142, 1
          %s658 = scalar_lea.sflag [#allocation4], %s657
          %s659 = sand.u32 %s142, 1
          %s660 = smul.addr %s659, 32
          %s661 = scalar_lea.vmem [#allocation8], %s660
          %662 = dma.done %s658, 512
        $region64: #{tpu_custom_call.1} parent=59 // pred_fallthru
          _
      $region60: #{tpu_custom_call.1} parent=5 // pred_fallthru
        _
    $region6: #{tpu_custom_call.1} parent=1 // loop_footer
      %s22 = sadd.s32 1, %s18
    $region7: #{tpu_custom_call.1} parent=1 // loop_footer_branch
      %17 = sbr.rel target = $region3
    $region8: #{tpu_custom_call.1} parent=1 // loop_exit
      _
    %663 = vsyncpa [#allocation3], 1
    %s664 = scalar_lea.sflag [#allocation3], 1
    %665 = vsyncpa %s664, 1
    %666 = vsyncpa [#allocation6], 1
    %667 = vsyncpa [#allocation4], 1
    %s668 = scalar_lea.sflag [#allocation4], 1
    %669 = vsyncpa %s668, 1

</llo_original>
